<compile_context>
chip_gen: v5e
topology: v5e:2x2
jax: 0.10.0
libtpu: 0.0.40
codegen_flags: <defaults>
</compile_context>

<pallas_src>
import numpy as np
import jax
import jax.numpy as jnp
from jax.experimental import pallas as pl
from jax.experimental.pallas import tpu as pltpu


def _round_up(a, m):
    return -(-a // m) * m


def _embed_gather_kernel(idx_ref, tbl_ref, out_ref):
    # idx_ref : (R, P) int32 -- P packed token (table-row) indices per output row.
    # tbl_ref : (V_pad, D)   -- VMEM-resident embedding table (single-buffered).
    # out_ref : (R, P * D)   -- lane-dense output tile (P*D == 128 when D < 128).
    idx = idx_ref[...]
    R, P = idx.shape
    V_pad, D = tbl_ref.shape
    tbl = tbl_ref[...]

    # One (R, V_pad) iota shared by all packed slots.  Each slot builds a single
    # one-hot slab (VPU) and immediately feeds the MXU, so only ~one slab is
    # live at a time.
    col = jax.lax.broadcasted_iota(jnp.int32, (R, V_pad), 1)
    for p in range(P):
        onehot = (idx[:, p:p + 1] == col).astype(tbl.dtype)
        rows = jnp.dot(onehot, tbl, preferred_element_type=jnp.float32)
        # D-lane store into the already lane-dense VMEM tile (cheap); the
        # HBM-side output block stays a full 128-lane unmasked store.
        out_ref[:, p * D:(p + 1) * D] = rows.astype(out_ref.dtype)


def prepare_embedding_table(table, table_dtype=None):
    """Pad the vocab to a multiple of 128 (MXU contracting dim).

    Call once at init / weight update, NOT per forward call.  Pass
    table_dtype=jnp.bfloat16 on v6e/v7x to halve resident VMEM and run the MXU
    at native bf16 rate (the gather is an exact row copy; only the one-time
    f32->bf16 storage cast of the weights loses precision).
    """
    V, D = table.shape
    V_pad = _round_up(V, 128)
    dt = table.dtype if table_dtype is None else table_dtype
    return jnp.zeros((V_pad, D), dt).at[:V, :].set(table.astype(dt))


def features_embedding_forward(x, offsets, padded_table, num_embeddings,
                               *, token_cap=1024, out_dtype=jnp.float32):
    """x: (B, F) int, offsets: (F,) int, padded_table: (V_pad, D) -> (B, F, D)."""
    B, F = x.shape
    V_pad, D = padded_table.shape
    V = int(num_embeddings)
    N = B * F

    # Offset add + flatten (+ clip for bounds safety) once, in the wrapper.
    flat_idx = (x.astype(jnp.int32) + offsets.astype(jnp.int32)[None, :]).reshape(-1)
    flat_idx = jnp.clip(flat_idx, 0, V - 1)

    # Lane-packing factor: pack P consecutive tokens into one 128-lane row.
    P = 128 // D if (D < 128 and 128 % D == 0) else 1
    unit = 8 * P  # tokens per 8 output sublanes

    # --- VMEM-budget-aware token tile -------------------------------------
    try:
        vmem_cap = int(pltpu.get_tpu_info().vmem_capacity_bytes)
    except Exception:
        vmem_cap = 64 * 1024 * 1024  # conservative fallback (v7x per-core)
    vmem_budget = (vmem_cap * 7) // 8  # leave headroom below physical

    tbl_itemsize = jnp.dtype(padded_table.dtype).itemsize
    out_itemsize = jnp.dtype(out_dtype).itemsize

    def step_vmem_bytes(tokens):
        rows = tokens // P
        table_b = V_pad * D * tbl_itemsize          # single buffer (Buffered(1))
        idx_b = 2 * rows * P * 4                    # double-buffered index tile
        out_b = 2 * rows * P * D * out_itemsize     # double-buffered output tile
        scratch_b = 2 * rows * V_pad * 4            # iota + one one-hot slab
        return table_b + idx_b + out_b + scratch_b

    T = max(unit, min(_round_up(token_cap, unit), _round_up(N, unit)))
    # Prefer >= 2 grid steps so the "parallel" axis shards across v7x's 2 TCs.
    if N > unit and T >= _round_up(N, unit):
        T = max(unit, _round_up(-(-N // 2), unit))
    # Shrink until the per-step footprint fits the VMEM budget.
    while T > unit and step_vmem_bytes(T) > vmem_budget:
        T = max(unit, _round_up(T // 2, unit))

    Npad = _round_up(N, T)
    num_steps = Npad // T
    R = T // P  # output rows per grid step (multiple of 8)

    vmem_limit = int(min(vmem_budget, max(2 * step_vmem_bytes(T), 32 << 20)))

    # Packed index matrix: idx_mat[j, p] = flat_idx[j * P + p].
    idx_mat = jnp.pad(flat_idx, (0, Npad - N)).reshape(Npad // P, P)

    cost = pl.CostEstimate(
        flops=2 * Npad * V_pad * D,  # P matmuls of (R, V_pad) x (V_pad, D) / step
        transcendentals=0,
        bytes_accessed=Npad * 4 + Npad * D * out_itemsize + V_pad * D * tbl_itemsize,
    )

    out_packed = pl.pallas_call(
        _embed_gather_kernel,
        out_shape=jax.ShapeDtypeStruct((Npad // P, P * D), out_dtype),
        grid=(num_steps,),
        in_specs=[
            pl.BlockSpec((R, P), lambda i: (i, 0)),
            # Invariant, VMEM-resident table: single buffer (no double-buffer).
            pl.BlockSpec((V_pad, D), lambda i: (0, 0),
                         pipeline_mode=pl.Buffered(1)),
        ],
        out_specs=pl.BlockSpec((R, P * D), lambda i: (i, 0)),
        compiler_params=pltpu.CompilerParams(
            dimension_semantics=("parallel",),
            vmem_limit_bytes=vmem_limit,
        ),
        cost_estimate=cost,
    )(idx_mat, padded_table)

    # Contiguous layout plumbing back to (B, F, D).
    return out_packed.reshape(Npad, D)[:N].reshape(B, F, D)


if __name__ == "__main__":
    # Small, module-consistent shapes (exercises the 2-step "parallel" grid).
    field_dims = (10, 20, 30)          # num_fields = 3
    embed_dim = 32
    batch = 64

    vocab = int(sum(field_dims))
    num_fields = len(field_dims)

    # Deterministic parameter init (xavier_uniform over (vocab, embed_dim)).
    key = jax.random.PRNGKey(0)
    k_tbl, k_idx = jax.random.split(key)
    bound = float(np.sqrt(6.0 / (vocab + embed_dim)))
    table = jax.random.uniform(
        k_tbl, (vocab, embed_dim), dtype=jnp.float32, minval=-bound, maxval=bound
    )

    # Per-field offsets: (0, cumsum(field_dims)[:-1]) like the PyTorch module.
    offsets = jnp.asarray(
        np.array((0, *np.cumsum(field_dims)[:-1]), dtype=np.int32)
    )

    # Deterministic example input indices, each within its field's cardinality.
    idx_keys = jax.random.split(k_idx, num_fields)
    x = jnp.stack(
        [
            jax.random.randint(idx_keys[f], (batch,), 0, field_dims[f], dtype=jnp.int32)
            for f in range(num_fields)
        ],
        axis=1,
    )  # (batch, num_fields) int32

    # Hoisted out of the forward path: pad the table once at init.
    # (bf16 option on v6e/v7x: prepare_embedding_table(table, jnp.bfloat16))
    padded_table = prepare_embedding_table(table)

    out = features_embedding_forward(x, offsets, padded_table, vocab)
    out = jax.block_until_ready(out)

    # Pure-JAX reference check of the forward semantics.
    ref = table[(x + offsets[None, :]).astype(jnp.int32)]
    assert out.shape == (batch, num_fields, embed_dim)
    assert out.dtype == jnp.float32
    assert bool(jnp.allclose(out, ref, atol=1e-6)), "Pallas gather mismatch vs reference"

    print("KERNEL_OK")
</pallas_src>

<mosaic_0001>
module attributes {stable_mosaic.version = 11 : i64} {
  func.func @_embed_gather_kernel(%arg0: i32, %arg1: memref<24x4xi32, #tpu.memory_space<vmem>>, %arg2: memref<128x32xf32, #tpu.memory_space<vmem>>, %arg3: memref<24x128xf32, #tpu.memory_space<vmem>>) attributes {dimension_semantics = [#tpu.dimension_semantics<parallel>], iteration_bounds = array<i64: 2>, scalar_prefetch = 0 : i64, scratch_operands = 0 : i64, tpu.core_type = #tpu.core_type<tc>, window_params = [{transform_indices = @transform_0, window_bounds = array<i64: 24, 4>}, {pipeline_mode = #tpu.pipeline_mode<synchronous>, transform_indices = @transform_1, window_bounds = array<i64: 128, 32>}, {transform_indices = @transform_2, window_bounds = array<i64: 24, 128>}]} {
    %c0 = arith.constant 0 : index
    %c0_0 = arith.constant 0 : index
    %0 = vector.load %arg1[%c0, %c0_0] : memref<24x4xi32, #tpu.memory_space<vmem>>, vector<24x4xi32>
    %c0_1 = arith.constant 0 : index
    %c0_2 = arith.constant 0 : index
    %1 = vector.load %arg2[%c0_1, %c0_2] : memref<128x32xf32, #tpu.memory_space<vmem>>, vector<128x32xf32>
    %2 = tpu.iota {dimensions = array<i32: 1>} : vector<24x128xi32>
    %3 = vector.extract_strided_slice %0 {offsets = [0, 0], sizes = [24, 1], strides = [1, 1]} : vector<24x4xi32> to vector<24x1xi32>
    %4 = vector.broadcast %3 : vector<24x1xi32> to vector<24x128xi32>
    %5 = arith.cmpi eq, %4, %2 : vector<24x128xi32>
    %6 = arith.extui %5 : vector<24x128xi1> to vector<24x128xi32>
    %7 = arith.sitofp %6 : vector<24x128xi32> to vector<24x128xf32>
    %cst = arith.constant dense<0.000000e+00> : vector<24x32xf32>
    %8 = tpu.matmul %7, %1, %cst {dimension_numbers = #tpu.dot_dimension_numbers<[1], [0], [0], [1], [0, 0, 1, 1], [], []>} : vector<24x128xf32>, vector<128x32xf32>, vector<24x32xf32> -> vector<24x32xf32>
    %c0_3 = arith.constant 0 : index
    %c0_4 = arith.constant 0 : index
    %9 = vector.load %arg3[%c0_3, %c0_4] : memref<24x128xf32, #tpu.memory_space<vmem>>, vector<24x32xf32>
    tpu.vector_store %arg3[%c0_3, %c0_4], %8 {strides = array<i32>} : memref<24x128xf32, #tpu.memory_space<vmem>>, vector<24x32xf32>,
    %10 = vector.extract_strided_slice %0 {offsets = [0, 1], sizes = [24, 1], strides = [1, 1]} : vector<24x4xi32> to vector<24x1xi32>
    %11 = vector.broadcast %10 : vector<24x1xi32> to vector<24x128xi32>
    %12 = arith.cmpi eq, %11, %2 : vector<24x128xi32>
    %13 = arith.extui %12 : vector<24x128xi1> to vector<24x128xi32>
    %14 = arith.sitofp %13 : vector<24x128xi32> to vector<24x128xf32>
    %cst_5 = arith.constant dense<0.000000e+00> : vector<24x32xf32>
    %15 = tpu.matmul %14, %1, %cst_5 {dimension_numbers = #tpu.dot_dimension_numbers<[1], [0], [0], [1], [0, 0, 1, 1], [], []>} : vector<24x128xf32>, vector<128x32xf32>, vector<24x32xf32> -> vector<24x32xf32>
    %c0_6 = arith.constant 0 : index
    %c32 = arith.constant 32 : index
    %16 = vector.load %arg3[%c0_6, %c32] : memref<24x128xf32, #tpu.memory_space<vmem>>, vector<24x32xf32>
    tpu.vector_store %arg3[%c0_6, %c32], %15 {strides = array<i32>} : memref<24x128xf32, #tpu.memory_space<vmem>>, vector<24x32xf32>,
    %17 = vector.extract_strided_slice %0 {offsets = [0, 2], sizes = [24, 1], strides = [1, 1]} : vector<24x4xi32> to vector<24x1xi32>
    %18 = vector.broadcast %17 : vector<24x1xi32> to vector<24x128xi32>
    %19 = arith.cmpi eq, %18, %2 : vector<24x128xi32>
    %20 = arith.extui %19 : vector<24x128xi1> to vector<24x128xi32>
    %21 = arith.sitofp %20 : vector<24x128xi32> to vector<24x128xf32>
    %cst_7 = arith.constant dense<0.000000e+00> : vector<24x32xf32>
    %22 = tpu.matmul %21, %1, %cst_7 {dimension_numbers = #tpu.dot_dimension_numbers<[1], [0], [0], [1], [0, 0, 1, 1], [], []>} : vector<24x128xf32>, vector<128x32xf32>, vector<24x32xf32> -> vector<24x32xf32>
    %c0_8 = arith.constant 0 : index
    %c64 = arith.constant 64 : index
    %23 = vector.load %arg3[%c0_8, %c64] : memref<24x128xf32, #tpu.memory_space<vmem>>, vector<24x32xf32>
    tpu.vector_store %arg3[%c0_8, %c64], %22 {strides = array<i32>} : memref<24x128xf32, #tpu.memory_space<vmem>>, vector<24x32xf32>,
    %24 = vector.extract_strided_slice %0 {offsets = [0, 3], sizes = [24, 1], strides = [1, 1]} : vector<24x4xi32> to vector<24x1xi32>
    %25 = vector.broadcast %24 : vector<24x1xi32> to vector<24x128xi32>
    %26 = arith.cmpi eq, %25, %2 : vector<24x128xi32>
    %27 = arith.extui %26 : vector<24x128xi1> to vector<24x128xi32>
    %28 = arith.sitofp %27 : vector<24x128xi32> to vector<24x128xf32>
    %cst_9 = arith.constant dense<0.000000e+00> : vector<24x32xf32>
    %29 = tpu.matmul %28, %1, %cst_9 {dimension_numbers = #tpu.dot_dimension_numbers<[1], [0], [0], [1], [0, 0, 1, 1], [], []>} : vector<24x128xf32>, vector<128x32xf32>, vector<24x32xf32> -> vector<24x32xf32>
    %c0_10 = arith.constant 0 : index
    %c96 = arith.constant 96 : index
    %30 = vector.load %arg3[%c0_10, %c96] : memref<24x128xf32, #tpu.memory_space<vmem>>, vector<24x32xf32>
    tpu.vector_store %arg3[%c0_10, %c96], %29 {strides = array<i32>} : memref<24x128xf32, #tpu.memory_space<vmem>>, vector<24x32xf32>,
    return
  }
  func.func @transform_0(%arg0: i32) -> (i32, i32) {
    %c0_i32 = arith.constant 0 : i32
    %c0_i32_0 = arith.constant 0 : i32
    return %arg0, %c0_i32 : i32, i32
  }
  func.func @transform_1(%arg0: i32) -> (i32, i32) {
    %c0_i32 = arith.constant 0 : i32
    %c0_i32_0 = arith.constant 0 : i32
    %c0_i32_1 = arith.constant 0 : i32
    return %c0_i32, %c0_i32_0 : i32, i32
  }
  func.func @transform_2(%arg0: i32) -> (i32, i32) {
    %c0_i32 = arith.constant 0 : i32
    %c0_i32_0 = arith.constant 0 : i32
    return %arg0, %c0_i32 : i32, i32
  }
}

</mosaic_0001>

<llo_original>
// kernel: tpu_custom_call.1
$region0: #{tpu_custom_call.1}
  #allocation0 [shape = 'u32[]', space=smem, size = 0x4, offset = 0x4, fixed_abs, tag = 'smem constant byte address 0x4 - core index']
  #allocation1 [shape = 'u32[72,128]{1,0:T(1,128)}', space=vmem, size = 0x9000, scoped, tag = 'internal scratch']
  %s0 = inlined_call_operand.vmem [shape: s32[48,4], index: 0, kind: input, shape index: {}]
  %s1 = inlined_call_operand.vmem [shape: f32[128,32], index: 1, kind: input, shape index: {}]
  %s2 = inlined_call_operand.hbm [shape: f32[48,128], index: 2, kind: output, shape index: {}]
  %s3 = sld [smem:[#allocation0]]
  $region41: #{tpu_custom_call.1} parent=0
    _
  %s5 = ssub.s32 1, %s3
  %s6 = scalar_select 0, %s5, %s3
  $region1: #{tpu_custom_call.1} parent=0
    #allocation2 [shape = 'u8[24576]{0}', space=vmem, size = 0x6000, scoped, tag = 'output window, operand 0']
    #allocation3 [shape = 's32[2]{0}', space=sflag, size = 0x8, scoped, tag = 'scoped memory for tpu_custom_call.1']
    %7 = vsyncpa [#allocation3], 0
    %s8 = scalar_lea.sflag [#allocation3], 1
    %9 = vsyncpa %s8, 0
    loop: start=0, step=1, limit=4
    $region2: #{tpu_custom_call.1} parent=1 // loop_pre_header
      _
    $region3: #{tpu_custom_call.1} parent=1 // loop_header
      %s11 = sphi 0, %s15
      %p12 = scmp.ge.s32.totalorder %s11, 4
      %s21 = sphi 0, %s23
      %s24 = sphi 0, %s21
      %s25 = sphi 0, %s24
      %s41 = sphi 0, %s25
      %s45 = sphi 0, %s45
      %s47 = sphi 0, %s45
      %s48 = sphi 0, %s47
      %s62 = sphi 0, %s48
      %s68 = sphi 0, %s70
      %s71 = sphi 0, %s68
      %s72 = sphi 0, %s71
      %s88 = sphi 0, %s72
    $region4: #{tpu_custom_call.1} parent=1 // loop_header_branch
      %14 = sbr.rel (%p12) target = $region8
    $region5: #{tpu_custom_call.1} parent=1 // loop_body
      %s16 = ssub.s32 %s11, 1
      %s17 = ssub.s32 %s11, 2
      %s18 = sadd.s32 %s11, 1
      %s19 = ssub.s32 %s11, %s18
      %p20 = scmp.eq.s32.totalorder %s19, 0
      %s22 = sadd.s32 %s21, 1
      %s23 = scalar_select %p20, %s21, %s22
      %p26 = pneg %p20
      %p27 = scmp.eq.s32.totalorder %s11, 1
      %p28 = por %p26, %p27
      %p29 = scmp.ne.s32.totalorder %s21, %s24
      %p30 = scmp.eq.s32.totalorder %s11, 0
      %p31 = por %p29, %p30
      %p32 = scmp.ne.s32.totalorder %s21, %s24
      %p33 = scmp.eq.s32.totalorder %s16, 1
      %p34 = por %p32, %p33
      %p35 = scmp.ne.s32.totalorder %s24, %s25
      %p36 = scmp.eq.s32.totalorder %s16, 0
      %p37 = por %p35, %p36
      %p38 = scmp.ne.s32.totalorder %s24, %s25
      %p39 = scmp.eq.s32.totalorder %s17, 1
      %p40 = por %p38, %p39
      %p42 = scmp.ne.s32.totalorder %s25, %s41
      %p43 = scmp.eq.s32.totalorder %s17, 0
      %p44 = por %p42, %p43
      %s46 = sadd.s32 %s45, 1
      %p49 = scmp.eq.s32.totalorder %s11, 1
      %p50 = scmp.ne.s32.totalorder %s45, %s47
      %p51 = scmp.eq.s32.totalorder %s11, 0
      %p52 = por %p50, %p51
      %p53 = scmp.ne.s32.totalorder %s45, %s47
      %p54 = scmp.eq.s32.totalorder %s16, 1
      %p55 = por %p53, %p54
      %p56 = scmp.ne.s32.totalorder %s47, %s48
      %p57 = scmp.eq.s32.totalorder %s16, 0
      %p58 = por %p56, %p57
      %p59 = scmp.ne.s32.totalorder %s47, %s48
      %p60 = scmp.eq.s32.totalorder %s17, 1
      %p61 = por %p59, %p60
      %p63 = scmp.ne.s32.totalorder %s48, %s62
      %p64 = scmp.eq.s32.totalorder %s17, 0
      %p65 = por %p63, %p64
      %s66 = ssub.s32 %s11, %s18
      %p67 = scmp.eq.s32.totalorder %s66, 0
      %s69 = sadd.s32 %s68, 1
      %s70 = scalar_select %p67, %s68, %s69
      %p73 = pneg %p67
      %p74 = scmp.eq.s32.totalorder %s11, 1
      %p75 = por %p73, %p74
      %p76 = scmp.ne.s32.totalorder %s68, %s71
      %p77 = scmp.eq.s32.totalorder %s11, 0
      %p78 = por %p76, %p77
      %p79 = scmp.ne.s32.totalorder %s68, %s71
      %p80 = scmp.eq.s32.totalorder %s16, 1
      %p81 = por %p79, %p80
      %p82 = scmp.ne.s32.totalorder %s71, %s72
      %p83 = scmp.eq.s32.totalorder %s16, 0
      %p84 = por %p82, %p83
      %p85 = scmp.ne.s32.totalorder %s71, %s72
      %p86 = scmp.eq.s32.totalorder %s17, 1
      %p87 = por %p85, %p86
      %p89 = scmp.ne.s32.totalorder %s72, %s88
      %p90 = scmp.eq.s32.totalorder %s17, 0
      %p91 = por %p89, %p90
      %p92 = scmp.le.s32.totalorder 1, %s11
      %p93 = scmp.lt.s32.totalorder %s11, 3
      %p94 = pnand %p92, %p93
      %p95 = pneg %p94
      // Predicated region
      $region9: #{tpu_custom_call.1} parent=5 // pred_check
        _
      $region10: #{tpu_custom_call.1} parent=5 // pred_check_branch
        %97 = sbr.rel (%p94) target = $region12
      $region11: #{tpu_custom_call.1} parent=5 // pred_region
        %s98 = ssub.s32 %s11, 1
        // Predicated region
        $region13: #{tpu_custom_call.1} parent=11 // pred_check
          %p99 = pneg %p58
        $region14: #{tpu_custom_call.1} parent=11 // pred_check_branch
          %101 = sbr.rel (%p99) target = $region16
        $region15: #{tpu_custom_call.1} parent=11 // pred_region
          _
        $region16: #{tpu_custom_call.1} parent=11 // pred_fallthru
          _
      $region12: #{tpu_custom_call.1} parent=5 // pred_fallthru
        _
      %p102 = scmp.lt.s32.totalorder %s11, 2
      // Predicated region
      $region17: #{tpu_custom_call.1} parent=5 // pred_check
        %p103 = pneg %p102
      $region18: #{tpu_custom_call.1} parent=5 // pred_check_branch
        %105 = sbr.rel (%p103) target = $region20
      $region19: #{tpu_custom_call.1} parent=5 // pred_region
        // Predicated region
        $region21: #{tpu_custom_call.1} parent=19 // pred_check
          %p106 = pneg %p31
        $region22: #{tpu_custom_call.1} parent=19 // pred_check_branch
          %108 = sbr.rel (%p106) target = $region24
        $region23: #{tpu_custom_call.1} parent=19 // pred_region
          %s109 = smul.u32 3, %s11
          %p110 = scmp.lt.s32.totalorder %s109, 5
          %s111 = scalar_select %p110, %s109, 5
          %s112 = smul.addr %s111, 8
          %s113 = scalar_lea.vmem %s0, %s112
          %s114 = smul.u32 3, %s11
        $region24: #{tpu_custom_call.1} parent=19 // pred_fallthru
          _
      $region20: #{tpu_custom_call.1} parent=5 // pred_fallthru
        _
      %p115 = scmp.le.s32.totalorder 1, %s11
      %p116 = scmp.lt.s32.totalorder %s11, 3
      %p117 = pnand %p115, %p116
      %p118 = pneg %p117
      // Predicated region
      $region25: #{tpu_custom_call.1} parent=5 // pred_check
        _
      $region26: #{tpu_custom_call.1} parent=5 // pred_check_branch
        %120 = sbr.rel (%p117) target = $region28
      $region27: #{tpu_custom_call.1} parent=5 // pred_region
        %s121 = ssub.s32 %s11, 1
        %s122 = smul.u32 3, %s16
        %p123 = scmp.lt.s32.totalorder %s122, 5
        %s124 = scalar_select %p123, %s122, 5
        %s125 = smul.addr %s124, 8
        %s126 = scalar_lea.vmem %s0, %s125
        %p127 = pneg %p37
        %p128 = pneg %p34
        %p129 = pneg %p58
        %p130 = pneg %p55
        %p131 = pneg %p84
        %p132 = pneg %p81
        %s133 = sand.u32 %s71, 1
        %s134 = scalar_lea.sflag [#allocation3], %s133
        %s135 = sand.u32 %s71, 1
        %s136 = smul.addr %s135, 24
        %s137 = scalar_lea.vmem [#allocation2], %s136
        %s138 = smul.u32 3, %s16
        %p139 = scmp.lt.s32.totalorder %s138, 5
        %s140 = scalar_select %p139, %s138, 5
        %s141 = smul.addr %s140, 8
        %s142 = scalar_lea.vmem %s0, %s141
        %s143 = smul.u32 3, %s16
        %s144 = smul.u32 3, %s16
        %v145 = vld [vmem:[%s142] sm:$0xff]
        %v146 = vld [vmem:[%s142 + $0x8] sm:$0xff]
        %v147 = vld [vmem:[%s142 + $0x10] sm:$0xff]
        %v148 = vld [vmem:[%s1] sm:$0xff]
        %v149 = vld [vmem:[%s1 + $0x8] sm:$0xff]
        %v150 = vld [vmem:[%s1 + $0x10] sm:$0xff]
        %v151 = vld [vmem:[%s1 + $0x18] sm:$0xff]
        %v152 = vld [vmem:[%s1 + $0x20] sm:$0xff]
        %v153 = vld [vmem:[%s1 + $0x28] sm:$0xff]
        %v154 = vld [vmem:[%s1 + $0x30] sm:$0xff]
        %v155 = vld [vmem:[%s1 + $0x38] sm:$0xff]
        %v156 = vld [vmem:[%s1 + $0x40] sm:$0xff]
        %v157 = vld [vmem:[%s1 + $0x48] sm:$0xff]
        %v158 = vld [vmem:[%s1 + $0x50] sm:$0xff]
        %v159 = vld [vmem:[%s1 + $0x58] sm:$0xff]
        %v160 = vld [vmem:[%s1 + $0x60] sm:$0xff]
        %v161 = vld [vmem:[%s1 + $0x68] sm:$0xff]
        %v162 = vld [vmem:[%s1 + $0x70] sm:$0xff]
        %v163 = vld [vmem:[%s1 + $0x78] sm:$0xff]
        %v164 = vlaneseq
        %v165 = vand.u32 %v164, 127
        %166 = vset.pattern.permute.xlu0 0
        %167 = vperm.xlu0 %166, %v145
        %v168 = vpop.permute.xlu0 %167
        %169 = vset.pattern.permute.xlu0 0
        %170 = vperm.xlu0 %169, %v146
        %v171 = vpop.permute.xlu0 %170
        %172 = vset.pattern.permute.xlu0 0
        %173 = vperm.xlu0 %172, %v147
        %v174 = vpop.permute.xlu0 %173
        %vm175 = vcmp.eq.s32.totalorder %v168, %v165
        %vm176 = vcmp.eq.s32.totalorder %v171, %v165
        %vm177 = vcmp.eq.s32.totalorder %v174, %v165
        %v178 = vsel %vm175, 1, 0
        %v179 = vsel %vm176, 1, 0
        %v180 = vsel %vm177, 1, 0
        %v181 = vcvt.s32.f32 %v178
        %v182 = vcvt.s32.f32 %v179
        %v183 = vcvt.s32.f32 %v180
        %184 = vmatpush.msra.mxu0 %v163
        %185 = vmatpush.msra.mxu0 %v162
        %186 = vmatpush.msra.mxu0 %v161
        %187 = vmatpush.msra.mxu0 %v160
        %188 = vmatpush.msra.mxu0 %v159
        %189 = vmatpush.msra.mxu0 %v158
        %190 = vmatpush.msra.mxu0 %v157
        %191 = vmatpush.msra.mxu0 %v156
        %192 = vmatpush.msra.mxu0 %v155
        %193 = vmatpush.msra.mxu0 %v154
        %194 = vmatpush.msra.mxu0 %v153
        %195 = vmatpush.msra.mxu0 %v152
        %196 = vmatpush.msra.mxu0 %v151
        %197 = vmatpush.msra.mxu0 %v150
        %198 = vmatpush.msra.mxu0 %v149
        %199 = vmatpush.msra.mxu0 %v148
        %200 = vmatmul.f32.gmra.mxu0 %v181
        %v201 = vpop.f32.mrf.mxu0
        %v202 = vadd.f32 0.0, %v201
        %203 = vmatmul.f32.gmra.mxu0 %v182
        %v204 = vpop.f32.mrf.mxu0
        %v205 = vadd.f32 0.0, %v204
        %206 = vmatmul.f32.gmra.mxu0 %v183
        %v207 = vpop.f32.mrf.mxu0
        %v208 = vadd.f32 0.0, %v207
        %209 = vdwg.mxu0
        %vm210 = vcmask 261120
        %211 = vst.msk [vmem:[%s137] sm:$0xff] %vm210, %v202
        %212 = vst.msk [vmem:[%s137 + $0x8] sm:$0xff] %vm210, %v205
        %213 = vst.msk [vmem:[%s137 + $0x10] sm:$0xff] %vm210, %v208
        %214 = vset.pattern.permute.xlu0 1
        %215 = vperm.xlu0 %214, %v145
        %v216 = vpop.permute.xlu0 %215
        %217 = vset.pattern.permute.xlu0 1
        %218 = vperm.xlu0 %217, %v146
        %v219 = vpop.permute.xlu0 %218
        %220 = vset.pattern.permute.xlu0 1
        %221 = vperm.xlu0 %220, %v147
        %v222 = vpop.permute.xlu0 %221
        %vm223 = vcmp.eq.s32.totalorder %v216, %v165
        %vm224 = vcmp.eq.s32.totalorder %v219, %v165
        %vm225 = vcmp.eq.s32.totalorder %v222, %v165
        %v226 = vsel %vm223, 1, 0
        %v227 = vsel %vm224, 1, 0
        %v228 = vsel %vm225, 1, 0
        %v229 = vcvt.s32.f32 %v226
        %v230 = vcvt.s32.f32 %v227
        %v231 = vcvt.s32.f32 %v228
        %232 = vmatpush.msra.mxu0 %v163
        %233 = vmatpush.msra.mxu0 %v162
        %234 = vmatpush.msra.mxu0 %v161
        %235 = vmatpush.msra.mxu0 %v160
        %236 = vmatpush.msra.mxu0 %v159
        %237 = vmatpush.msra.mxu0 %v158
        %238 = vmatpush.msra.mxu0 %v157
        %239 = vmatpush.msra.mxu0 %v156
        %240 = vmatpush.msra.mxu0 %v155
        %241 = vmatpush.msra.mxu0 %v154
        %242 = vmatpush.msra.mxu0 %v153
        %243 = vmatpush.msra.mxu0 %v152
        %244 = vmatpush.msra.mxu0 %v151
        %245 = vmatpush.msra.mxu0 %v150
        %246 = vmatpush.msra.mxu0 %v149
        %247 = vmatpush.msra.mxu0 %v148
        %248 = vmatmul.f32.gmra.mxu0 %v229
        %v249 = vpop.f32.mrf.mxu0
        %v250 = vadd.f32 0.0, %v249
        %251 = vmatmul.f32.gmra.mxu0 %v230
        %v252 = vpop.f32.mrf.mxu0
        %v253 = vadd.f32 0.0, %v252
        %254 = vmatmul.f32.gmra.mxu0 %v231
        %v255 = vpop.f32.mrf.mxu0
        %v256 = vadd.f32 0.0, %v255
        %257 = vdwg.mxu0
        %261 = vrot.lane.b32.xlu0 %v250, 32
        %v262 = vpop.permute.xlu0 %261
        %263 = vrot.lane.b32.xlu0 %v253, 32
        %v264 = vpop.permute.xlu0 %263
        %265 = vrot.lane.b32.xlu0 %v256, 32
        %v266 = vpop.permute.xlu0 %265
        %vm270 = vcmask 523520
        %271 = vst.msk [vmem:[%s137] sm:$0xff] %vm270, %v262
        %272 = vst.msk [vmem:[%s137 + $0x8] sm:$0xff] %vm270, %v264
        %273 = vst.msk [vmem:[%s137 + $0x10] sm:$0xff] %vm270, %v266
        %274 = vset.pattern.permute.xlu0 2
        %275 = vperm.xlu0 %274, %v145
        %v276 = vpop.permute.xlu0 %275
        %277 = vset.pattern.permute.xlu0 2
        %278 = vperm.xlu0 %277, %v146
        %v279 = vpop.permute.xlu0 %278
        %280 = vset.pattern.permute.xlu0 2
        %281 = vperm.xlu0 %280, %v147
        %v282 = vpop.permute.xlu0 %281
        %vm283 = vcmp.eq.s32.totalorder %v276, %v165
        %vm284 = vcmp.eq.s32.totalorder %v279, %v165
        %vm285 = vcmp.eq.s32.totalorder %v282, %v165
        %v286 = vsel %vm283, 1, 0
        %v287 = vsel %vm284, 1, 0
        %v288 = vsel %vm285, 1, 0
        %v289 = vcvt.s32.f32 %v286
        %v290 = vcvt.s32.f32 %v287
        %v291 = vcvt.s32.f32 %v288
        %292 = vmatpush.msra.mxu0 %v163
        %293 = vmatpush.msra.mxu0 %v162
        %294 = vmatpush.msra.mxu0 %v161
        %295 = vmatpush.msra.mxu0 %v160
        %296 = vmatpush.msra.mxu0 %v159
        %297 = vmatpush.msra.mxu0 %v158
        %298 = vmatpush.msra.mxu0 %v157
        %299 = vmatpush.msra.mxu0 %v156
        %300 = vmatpush.msra.mxu0 %v155
        %301 = vmatpush.msra.mxu0 %v154
        %302 = vmatpush.msra.mxu0 %v153
        %303 = vmatpush.msra.mxu0 %v152
        %304 = vmatpush.msra.mxu0 %v151
        %305 = vmatpush.msra.mxu0 %v150
        %306 = vmatpush.msra.mxu0 %v149
        %307 = vmatpush.msra.mxu0 %v148
        %308 = vmatmul.f32.gmra.mxu0 %v289
        %v309 = vpop.f32.mrf.mxu0
        %v310 = vadd.f32 0.0, %v309
        %311 = vmatmul.f32.gmra.mxu0 %v290
        %v312 = vpop.f32.mrf.mxu0
        %v313 = vadd.f32 0.0, %v312
        %314 = vmatmul.f32.gmra.mxu0 %v291
        %v315 = vpop.f32.mrf.mxu0
        %v316 = vadd.f32 0.0, %v315
        %317 = vdwg.mxu0
        %321 = vrot.lane.b32.xlu0 %v310, 64
        %v322 = vpop.permute.xlu0 %321
        %323 = vrot.lane.b32.xlu0 %v313, 64
        %v324 = vpop.permute.xlu0 %323
        %325 = vrot.lane.b32.xlu0 %v316, 64
        %v326 = vpop.permute.xlu0 %325
        %vm330 = vcmask 785920
        %331 = vst.msk [vmem:[%s137] sm:$0xff] %vm330, %v322
        %332 = vst.msk [vmem:[%s137 + $0x8] sm:$0xff] %vm330, %v324
        %333 = vst.msk [vmem:[%s137 + $0x10] sm:$0xff] %vm330, %v326
        %334 = vset.pattern.permute.xlu0 3
        %335 = vperm.xlu0 %334, %v145
        %v336 = vpop.permute.xlu0 %335
        %337 = vset.pattern.permute.xlu0 3
        %338 = vperm.xlu0 %337, %v146
        %v339 = vpop.permute.xlu0 %338
        %340 = vset.pattern.permute.xlu0 3
        %341 = vperm.xlu0 %340, %v147
        %v342 = vpop.permute.xlu0 %341
        %vm343 = vcmp.eq.s32.totalorder %v336, %v165
        %vm344 = vcmp.eq.s32.totalorder %v339, %v165
        %vm345 = vcmp.eq.s32.totalorder %v342, %v165
        %v346 = vsel %vm343, 1, 0
        %v347 = vsel %vm344, 1, 0
        %v348 = vsel %vm345, 1, 0
        %v349 = vcvt.s32.f32 %v346
        %v350 = vcvt.s32.f32 %v347
        %v351 = vcvt.s32.f32 %v348
        %352 = vmatpush.msra.mxu0 %v163
        %353 = vmatpush.msra.mxu0 %v162
        %354 = vmatpush.msra.mxu0 %v161
        %355 = vmatpush.msra.mxu0 %v160
        %356 = vmatpush.msra.mxu0 %v159
        %357 = vmatpush.msra.mxu0 %v158
        %358 = vmatpush.msra.mxu0 %v157
        %359 = vmatpush.msra.mxu0 %v156
        %360 = vmatpush.msra.mxu0 %v155
        %361 = vmatpush.msra.mxu0 %v154
        %362 = vmatpush.msra.mxu0 %v153
        %363 = vmatpush.msra.mxu0 %v152
        %364 = vmatpush.msra.mxu0 %v151
        %365 = vmatpush.msra.mxu0 %v150
        %366 = vmatpush.msra.mxu0 %v149
        %367 = vmatpush.msra.mxu0 %v148
        %368 = vmatmul.f32.gmra.mxu0 %v349
        %v369 = vpop.f32.mrf.mxu0
        %v370 = vadd.f32 0.0, %v369
        %371 = vmatmul.f32.gmra.mxu0 %v350
        %v372 = vpop.f32.mrf.mxu0
        %v373 = vadd.f32 0.0, %v372
        %374 = vmatmul.f32.gmra.mxu0 %v351
        %v375 = vpop.f32.mrf.mxu0
        %v376 = vadd.f32 0.0, %v375
        %377 = vdwg.mxu0
        %381 = vrot.lane.b32.xlu0 %v370, 96
        %v382 = vpop.permute.xlu0 %381
        %383 = vrot.lane.b32.xlu0 %v373, 96
        %v384 = vpop.permute.xlu0 %383
        %385 = vrot.lane.b32.xlu0 %v376, 96
        %v386 = vpop.permute.xlu0 %385
        %vm390 = vcmask 1048320
        %391 = vst.msk [vmem:[%s137] sm:$0xff] %vm390, %v382
        %392 = vst.msk [vmem:[%s137 + $0x8] sm:$0xff] %vm390, %v384
        %393 = vst.msk [vmem:[%s137 + $0x10] sm:$0xff] %vm390, %v386
        %s394 = sand.u32 %s71, 1
        %s395 = scalar_lea.sflag [#allocation3], %s394
        %s396 = sand.u32 %s71, 1
        %s397 = smul.addr %s396, 24
        %s398 = scalar_lea.vmem [#allocation2], %s397
        // Predicated region
        $region29: #{tpu_custom_call.1} parent=27 // pred_check
          %p399 = pneg %p81
        $region30: #{tpu_custom_call.1} parent=27 // pred_check_branch
          %401 = sbr.rel (%p399) target = $region32
        $region31: #{tpu_custom_call.1} parent=27 // pred_region
          %s402 = smul.u32 3, %s16
          %404 = vsyncadd %s395, 0
          %s405 = smul.addr %s402, 8
          %s406 = scalar_lea.hbm %s2, %s405
          %s407 = sshll.u32 %s398, 4
          %s408 = int_to_ptr.vmem [resolvable:$true] %s407
          %s409 = sshll.u32 %s406, 4
          %s410 = int_to_ptr.hbm [resolvable:$true] %s409
          %415 = dma.vmem_to_hbm [thread:$0]  %s408, 384, %s410, %s395, 128, 128, 8
        $region32: #{tpu_custom_call.1} parent=27 // pred_fallthru
          _
      $region28: #{tpu_custom_call.1} parent=5 // pred_fallthru
        _
      %p416 = scmp.le.s32.totalorder 2, %s11
      // Predicated region
      $region33: #{tpu_custom_call.1} parent=5 // pred_check
        %p417 = pneg %p416
      $region34: #{tpu_custom_call.1} parent=5 // pred_check_branch
        %419 = sbr.rel (%p417) target = $region36
      $region35: #{tpu_custom_call.1} parent=5 // pred_region
        %s420 = ssub.s32 %s11, 2
        // Predicated region
        $region37: #{tpu_custom_call.1} parent=35 // pred_check
          %p421 = pneg %p87
        $region38: #{tpu_custom_call.1} parent=35 // pred_check_branch
          %423 = sbr.rel (%p421) target = $region40
        $region39: #{tpu_custom_call.1} parent=35 // pred_region
          %s424 = sand.u32 %s72, 1
          %s425 = scalar_lea.sflag [#allocation3], %s424
          %s426 = sand.u32 %s72, 1
          %s427 = smul.addr %s426, 24
          %s428 = scalar_lea.vmem [#allocation2], %s427
          %430 = dma.done %s425, 384
        $region40: #{tpu_custom_call.1} parent=35 // pred_fallthru
          _
      $region36: #{tpu_custom_call.1} parent=5 // pred_fallthru
        _
    $region6: #{tpu_custom_call.1} parent=1 // loop_footer
      %s15 = sadd.s32 1, %s11
    $region7: #{tpu_custom_call.1} parent=1 // loop_footer_branch
      %10 = sbr.rel target = $region3
    $region8: #{tpu_custom_call.1} parent=1 // loop_exit
      _
    %431 = vsyncpa [#allocation3], 1
    %s432 = scalar_lea.sflag [#allocation3], 1
    %433 = vsyncpa %s432, 1

</llo_original>
